<compile_context>
chip_gen: v6e
topology: v6e:2x2x1
jax: 0.10.0
libtpu: 0.0.40
codegen_flags: <defaults>
</compile_context>

<pallas_src>
import functools

import jax
import jax.numpy as jnp
from jax.experimental import pallas as pl
from jax.experimental.pallas import tpu as pltpu


def _focal_partial_kernel(x_ref, t_ref, out_ref, *, batch, tile_b, has_tail):
    """Partial sum over this batch-tile of sum_c(-t * log_softmax(x))."""
    x = x_ref[...].astype(jnp.float32)                          # (tile_b, C)
    t = t_ref[...].astype(jnp.float32)                          # (tile_b, C)

    # logsumexp along the class (lane) dim: pass 1 (max) + pass 2 (exp-sum).
    m = jnp.max(x, axis=-1, keepdims=True)                      # (tile_b, 1)
    lse = m + jnp.log(jnp.sum(jnp.exp(x - m), axis=-1, keepdims=True))

    # sum_c(-t * log_softmax(x)) == sum_c(t * (lse - x)) : single fused pass 3.
    row_loss = jnp.sum(t * (lse - x), axis=-1, keepdims=True)   # (tile_b, 1)

    if has_tail:
        # Ragged last tile: mask invalid rows with one (tile_b, 1) select.
        # The select discards any NaN/Inf produced by garbage tail rows.
        i = pl.program_id(0)
        row = jax.lax.broadcasted_iota(jnp.int32, (tile_b, 1), 0) + i * tile_b
        row_loss = jnp.where(row < batch, row_loss, 0.0)

    partial = jnp.sum(row_loss)                                  # scalar for this tile
    # Lane-dense, unmasked store of the per-tile partial.
    out_ref[...] = jnp.full(out_ref.shape, partial, dtype=out_ref.dtype)


def _choose_config(batch, n_classes):
    """Generation-aware (tile_b, vmem_limit_bytes).

    Budgets use 4 bytes/element so f32 intermediates of bf16 inputs are covered.
    """
    padded_c = ((n_classes + 127) // 128) * 128      # VMEM lanes are 128-wide
    try:
        vmem_cap = getattr(pltpu.get_tpu_info(), "vmem_capacity_bytes", 128 << 20)
    except Exception:  # pragma: no cover - be robust off-TPU / older jax
        vmem_cap = 128 << 20

    if vmem_cap <= (80 << 20):
        # v7x-class: 64 MiB VMEM per TensorCore, 2 TCs per chip.
        per_buffer_bytes = 6 << 20                   # 2 in x 2 bufs -> 24 MiB in flight
        vmem_limit = 48 << 20
        two_cores = True
    else:
        # v5e / v6e: 128 MiB VMEM, single TensorCore.
        per_buffer_bytes = 8 << 20                   # 2 in x 2 bufs -> 32 MiB in flight
        vmem_limit = 64 << 20
        two_cores = False

    row_bytes = padded_c * 4                         # f32 footprint per row
    tb = per_buffer_bytes // row_bytes
    tb = max(8, (tb // 8) * 8)                       # sublane multiple
    b_rounded = ((batch + 7) // 8) * 8
    tb = min(tb, b_rounded)

    if two_cores and b_rounded > 8:
        # Keep >= 2 grid steps so dimension_semantics=("parallel",) can shard
        # the grid across both v7x TensorCores.
        half = ((((batch + 1) // 2) + 7) // 8) * 8
        tb = min(tb, max(8, half))

    return int(tb), int(vmem_limit)


def focal_loss(inputs, targets, *, alpha=1.0, gamma=2.0, tile_b=None):
    """inputs, targets: [B, C] float (f32 or bf16). Returns scalar f32 focal loss."""
    B, C = inputs.shape
    assert targets.shape == (B, C)

    auto_tb, vmem_limit = _choose_config(B, C)
    if tile_b is None:
        tile_b = auto_tb
    num_tiles = pl.cdiv(B, tile_b)
    has_tail = (B % tile_b) != 0

    kernel = functools.partial(
        _focal_partial_kernel, batch=B, tile_b=tile_b, has_tail=has_tail
    )

    in_bytes = jnp.dtype(inputs.dtype).itemsize
    tg_bytes = jnp.dtype(targets.dtype).itemsize
    cost = pl.CostEstimate(
        flops=6 * B * C,                              # sub/mul/add per element (rough)
        transcendentals=B * C + B,                    # exp per element + log per row
        bytes_accessed=B * C * (in_bytes + tg_bytes) + num_tiles * 8 * 128 * 4,
    )

    partials = pl.pallas_call(
        kernel,
        out_shape=jax.ShapeDtypeStruct((num_tiles, 8, 128), jnp.float32),
        grid=(num_tiles,),
        in_specs=[
            pl.BlockSpec((tile_b, C), lambda i: (i, 0)),
            pl.BlockSpec((tile_b, C), lambda i: (i, 0)),
        ],
        out_specs=pl.BlockSpec((1, 8, 128), lambda i: (i, 0, 0)),
        compiler_params=pltpu.CompilerParams(
            # Independent batch tiles: shard across TensorCores on v7x.
            dimension_semantics=("parallel",),
            vmem_limit_bytes=vmem_limit,
        ),
        cost_estimate=cost,
    )(inputs, targets)

    # Tiny O(num_tiles) + O(1) epilogue: mean over batch + focal transform.
    total = jnp.sum(partials[:, 0, 0])
    bce = total / jnp.float32(B)
    pt = jnp.exp(-bce)
    # Matches PyTorch exactly: alpha * (1 - pt)**gamma * bce  (no extra clamp).
    return jnp.float32(alpha) * (1.0 - pt) ** jnp.float32(gamma) * bce


def _focal_loss_ref(inputs, targets, alpha=1.0, gamma=2.0):
    logp = jax.nn.log_softmax(inputs.astype(jnp.float32), axis=-1)
    bce = jnp.mean(jnp.sum(-targets.astype(jnp.float32) * logp, axis=-1))
    pt = jnp.exp(-bce)
    return alpha * (1.0 - pt) ** gamma * bce


if __name__ == "__main__":
    key = jax.random.PRNGKey(0)
    k1, k2, k3, k4 = jax.random.split(key, 4)

    # Case 1: small classification-head shapes, divisible batch, auto tile size
    # (exercises the no-tail-mask fast path).
    B, C = 16, 32
    logits = jax.random.normal(k1, (B, C), dtype=jnp.float32)
    raw = jax.random.uniform(k2, (B, C), dtype=jnp.float32)
    targets = raw / jnp.sum(raw, axis=-1, keepdims=True)   # soft (label-smoothed) targets

    out = jax.block_until_ready(focal_loss(logits, targets, alpha=1.0, gamma=2.0))
    ref = _focal_loss_ref(logits, targets, alpha=1.0, gamma=2.0)
    assert jnp.allclose(out, ref, rtol=1e-5, atol=1e-5), (out, ref)

    # Case 2: non-divisible batch (exercises cdiv grid + row_loss tail masking).
    B2 = 19
    logits2 = jax.random.normal(k3, (B2, C), dtype=jnp.float32)
    raw2 = jax.random.uniform(k4, (B2, C), dtype=jnp.float32)
    targets2 = raw2 / jnp.sum(raw2, axis=-1, keepdims=True)

    out2 = jax.block_until_ready(
        focal_loss(logits2, targets2, alpha=0.5, gamma=2.0, tile_b=8)
    )
    ref2 = _focal_loss_ref(logits2, targets2, alpha=0.5, gamma=2.0)
    assert jnp.allclose(out2, ref2, rtol=1e-5, atol=1e-5), (out2, ref2)

    # Case 3: bf16 inputs (halves HBM traffic; kernel math stays f32).
    out3 = jax.block_until_ready(
        focal_loss(logits.astype(jnp.bfloat16), targets.astype(jnp.bfloat16))
    )
    ref3 = _focal_loss_ref(logits.astype(jnp.bfloat16), targets.astype(jnp.bfloat16))
    assert jnp.allclose(out3, ref3, rtol=1e-4, atol=1e-4), (out3, ref3)

    print("KERNEL_OK")
</pallas_src>

<mosaic_0001>
module attributes {stable_mosaic.version = 11 : i64} {
  func.func @_focal_partial_kernel(%arg0: i32, %arg1: memref<16x32xf32, #tpu.memory_space<vmem>>, %arg2: memref<16x32xf32, #tpu.memory_space<vmem>>, %arg3: memref<1x8x128xf32, #tpu.memory_space<vmem>>) attributes {dimension_semantics = [#tpu.dimension_semantics<parallel>], iteration_bounds = array<i64: 1>, scalar_prefetch = 0 : i64, scratch_operands = 0 : i64, tpu.core_type = #tpu.core_type<tc>, window_params = [{transform_indices = @transform_0, window_bounds = array<i64: 16, 32>}, {transform_indices = @transform_1, window_bounds = array<i64: 16, 32>}, {transform_indices = @transform_2, window_bounds = array<i64: 1, 8, 128>}]} {
    %c0 = arith.constant 0 : index
    %c0_0 = arith.constant 0 : index
    %0 = vector.load %arg1[%c0, %c0_0] : memref<16x32xf32, #tpu.memory_space<vmem>>, vector<16x32xf32>
    %c0_1 = arith.constant 0 : index
    %c0_2 = arith.constant 0 : index
    %1 = vector.load %arg2[%c0_1, %c0_2] : memref<16x32xf32, #tpu.memory_space<vmem>>, vector<16x32xf32>
    %cst = arith.constant dense<0xFF800000> : vector<16xf32>
    %2 = vector.multi_reduction <maximumf>, %0, %cst [1] : vector<16x32xf32> to vector<16xf32>
    %3 = vector.shape_cast %2 : vector<16xf32> to vector<16x1xf32>
    %4 = vector.broadcast %3 : vector<16x1xf32> to vector<16x32xf32>
    %5 = arith.subf %0, %4 : vector<16x32xf32>
    %6 = math.exp %5 : vector<16x32xf32>
    %cst_3 = arith.constant dense<0.000000e+00> : vector<16xf32>
    %7 = vector.multi_reduction <add>, %6, %cst_3 [1] : vector<16x32xf32> to vector<16xf32>
    %8 = vector.shape_cast %7 : vector<16xf32> to vector<16x1xf32>
    %9 = math.log %8 : vector<16x1xf32>
    %10 = arith.addf %3, %9 : vector<16x1xf32>
    %11 = vector.broadcast %10 : vector<16x1xf32> to vector<16x32xf32>
    %12 = arith.subf %11, %0 : vector<16x32xf32>
    %13 = arith.mulf %1, %12 : vector<16x32xf32>
    %cst_4 = arith.constant dense<0.000000e+00> : vector<16xf32>
    %14 = vector.multi_reduction <add>, %13, %cst_4 [1] : vector<16x32xf32> to vector<16xf32>
    %15 = vector.shape_cast %14 : vector<16xf32> to vector<16x1xf32>
    %16 = vector.shape_cast %15 : vector<16x1xf32> to vector<1x16x1xf32>
    %cst_5 = arith.constant dense<0.000000e+00> : vector<1xf32>
    %17 = vector.multi_reduction <add>, %16, %cst_5 [1, 2] : vector<1x16x1xf32> to vector<1xf32>
    %18 = vector.shape_cast %17 : vector<1xf32> to vector<1x1x1xf32>
    %19 = vector.extract %18[0, 0, 0] : f32 from vector<1x1x1xf32>
    %20 = vector.broadcast %19 : f32 to vector<1x8x128xf32>
    %c0_6 = arith.constant 0 : index
    %c0_7 = arith.constant 0 : index
    %c0_8 = arith.constant 0 : index
    %21 = vector.load %arg3[%c0_6, %c0_7, %c0_8] : memref<1x8x128xf32, #tpu.memory_space<vmem>>, vector<1x8x128xf32>
    tpu.vector_store %arg3[%c0_6, %c0_7, %c0_8], %20 {strides = array<i32>} : memref<1x8x128xf32, #tpu.memory_space<vmem>>, vector<1x8x128xf32>,
    return
  }
  func.func @transform_0(%arg0: i32) -> (i32, i32) {
    %c0_i32 = arith.constant 0 : i32
    %c0_i32_0 = arith.constant 0 : i32
    return %arg0, %c0_i32 : i32, i32
  }
  func.func @transform_1(%arg0: i32) -> (i32, i32) {
    %c0_i32 = arith.constant 0 : i32
    %c0_i32_0 = arith.constant 0 : i32
    return %arg0, %c0_i32 : i32, i32
  }
  func.func @transform_2(%arg0: i32) -> (i32, i32, i32) {
    %c0_i32 = arith.constant 0 : i32
    %c0_i32_0 = arith.constant 0 : i32
    %c0_i32_1 = arith.constant 0 : i32
    return %arg0, %c0_i32, %c0_i32_0 : i32, i32, i32
  }
}

</mosaic_0001>

<llo_original>
// kernel: tpu_custom_call.1
$region0: #{tpu_custom_call.1}
  #allocation0 [shape = 'u32[]', space=smem, size = 0x4, offset = 0x4, fixed_abs, tag = 'smem constant byte address 0x4 - core index']
  #allocation1 [shape = 'u32[144,128]{1,0:T(1,128)}', space=vmem, size = 0x12000, scoped, tag = 'internal scratch']
  %s0 = inlined_call_operand.hbm [shape: f32[16,32], index: 0, kind: input, shape index: {}]
  %s1 = inlined_call_operand.hbm [shape: f32[16,32], index: 1, kind: input, shape index: {}]
  %s2 = inlined_call_operand.hbm [shape: f32[1,8,128], index: 2, kind: output, shape index: {}]
  %s3 = sld [smem:[#allocation0]]
  $region26: #{tpu_custom_call.1} parent=0
    _
  %s5 = ssub.s32 1, %s3
  %s6 = scalar_select 0, %s5, %s3
  $region1: #{tpu_custom_call.1} parent=0
    #allocation2 [shape = 'u8[8192]{0}', space=vmem, size = 0x2000, scoped, tag = 'input window, operand 0, single buffered']
    #allocation3 [shape = 's32[1]{0}', space=sflag, size = 0x4, scoped, tag = 'scoped memory for tpu_custom_call.1']
    #allocation4 [shape = 's32[1]{0}', space=sflag, size = 0x4, scoped, tag = 'scoped memory for tpu_custom_call.1']
    #allocation5 [shape = 'u8[8192]{0}', space=vmem, size = 0x2000, scoped, tag = 'input window, operand 1, single buffered']
    #allocation6 [shape = 's32[1]{0}', space=sflag, size = 0x4, scoped, tag = 'scoped memory for tpu_custom_call.1']
    #allocation7 [shape = 'u8[4096]{0}', space=vmem, size = 0x1000, scoped, tag = 'output window, operand 0, single buffered']
    %7 = vsyncpa [#allocation3], 0
    %8 = vsyncpa [#allocation6], 0
    %9 = vsyncpa [#allocation4], 0
    // Predicated region
    $region2: #{tpu_custom_call.1} parent=1 // pred_check
      _
    $region3: #{tpu_custom_call.1} parent=1 // pred_check_branch
      %11 = sbr.rel (0) target = $region5
    $region4: #{tpu_custom_call.1} parent=1 // pred_region
      %s13 = ssub.s32 256, 256
      %14 = vsyncadd [#allocation3], %s13
      %s15 = sshll.u32 [#allocation2], 4
      %s16 = int_to_ptr.vmem [resolvable:$true] %s15
      %21 = dma.hbm_to_vmem [thread:$0]  %s0, 256, %s16, [#allocation3], 128, 128, 8
    $region5: #{tpu_custom_call.1} parent=1 // pred_fallthru
      _
    // Predicated region
    $region6: #{tpu_custom_call.1} parent=1 // pred_check
      _
    $region7: #{tpu_custom_call.1} parent=1 // pred_check_branch
      %23 = sbr.rel (0) target = $region9
    $region8: #{tpu_custom_call.1} parent=1 // pred_region
      %s25 = ssub.s32 256, 256
      %26 = vsyncadd [#allocation6], %s25
      %s27 = sshll.u32 [#allocation5], 4
      %s28 = int_to_ptr.vmem [resolvable:$true] %s27
      %33 = dma.hbm_to_vmem [thread:$0]  %s1, 256, %s28, [#allocation6], 128, 128, 8
    $region9: #{tpu_custom_call.1} parent=1 // pred_fallthru
      _
    // Predicated region
    $region10: #{tpu_custom_call.1} parent=1 // pred_check
      _
    $region11: #{tpu_custom_call.1} parent=1 // pred_check_branch
      %35 = sbr.rel (0) target = $region13
    $region12: #{tpu_custom_call.1} parent=1 // pred_region
      %36 = dma.done [#allocation3], 256
    $region13: #{tpu_custom_call.1} parent=1 // pred_fallthru
      _
    // Predicated region
    $region14: #{tpu_custom_call.1} parent=1 // pred_check
      _
    $region15: #{tpu_custom_call.1} parent=1 // pred_check_branch
      %38 = sbr.rel (0) target = $region17
    $region16: #{tpu_custom_call.1} parent=1 // pred_region
      %39 = dma.done [#allocation6], 256
    $region17: #{tpu_custom_call.1} parent=1 // pred_fallthru
      _
    %v40 = vld [vmem:[#allocation2] sm:$0xff]
    %v41 = vld [vmem:[#allocation2 + $0x8] sm:$0xff]
    %v42 = vld [vmem:[#allocation5] sm:$0xff]
    %v43 = vld [vmem:[#allocation5 + $0x8] sm:$0xff]
    %vm44 = vcmask 261120
    %v45 = vsel %vm44, %v40, -inf
    %46 = vmax.xlane.f32.xlu0 %v45
    %v47 = vpop.xlane.xlu0 %46
    %v48 = vsel %vm44, %v41, -inf
    %49 = vmax.xlane.f32.xlu0 %v48
    %v50 = vpop.xlane.xlu0 %49
    %v51 = vsub.f32 %v40, %v47
    %v52 = vsub.f32 %v41, %v50
    %v53 = vmul.f32 %v51, 1.442695
    %v54 = vpow.pop %v53
    %v55 = vmul.f32 %v52, 1.442695
    %v56 = vpow.pop %v55
    %v57 = vsel %vm44, %v54, 0.0
    %58 = vadd.xlane.f32.xlu0 %v57
    %v59 = vpop.xlane.xlu0 %58
    %v60 = vsel %vm44, %v56, 0.0
    %61 = vadd.xlane.f32.xlu0 %v60
    %v62 = vpop.xlane.xlu0 %61
    %v63 = vlog2.pop %v59
    %v64 = vmul.f32 %v63, 0.6931472
    %v65 = vlog2.pop %v62
    %v66 = vmul.f32 %v65, 0.6931472
    %v67 = vadd.f32 %v47, %v64
    %v68 = vadd.f32 %v50, %v66
    %v69 = vsub.f32 %v67, %v40
    %v70 = vsub.f32 %v68, %v41
    %v71 = vmul.f32 %v42, %v69
    %v72 = vmul.f32 %v43, %v70
    %v73 = vsel %vm44, %v71, 0.0
    %74 = vadd.xlane.f32.xlu0 %v73
    %v75 = vpop.xlane.xlu0 %74
    %v76 = vsel %vm44, %v72, 0.0
    %77 = vadd.xlane.f32.xlu0 %v76
    %v78 = vpop.xlane.xlu0 %77
    %vm79 = vcmask 7168
    %v80 = vsel %vm79, %v75, 0.0
    %v81 = vsel %vm79, %v78, 0.0
    %v82 = vadd.f32 %v80, %v81
    %83 = vadd.xlane.f32.xlu0 %v82
    %v84 = vpop.xlane.xlu0 %83
    %v85 = vrot.slane %v84, 4
    %v86 = vadd.f32 %v84, %v85
    %v87 = vrot.slane %v86, 2
    %v88 = vadd.f32 %v86, %v87
    %v89 = vrot.slane %v88, 1
    %v90 = vadd.f32 %v88, %v89
    %s91 = vtos %v90
    %v92 = vstv %s91
    %93 = vst [vmem:[#allocation7] sm:$0xff] %v92
    // Predicated region
    $region18: #{tpu_custom_call.1} parent=1 // pred_check
      _
    $region19: #{tpu_custom_call.1} parent=1 // pred_check_branch
      %95 = sbr.rel (0) target = $region21
    $region20: #{tpu_custom_call.1} parent=1 // pred_region
      %s97 = ssub.s32 128, 128
      %98 = vsyncadd [#allocation4], %s97
      %s100 = sshll.u32 [#allocation7], 4
      %s101 = int_to_ptr.vmem [resolvable:$true] %s100
      %103 = dma.vmem_to_hbm [thread:$0]  %s101, 128, %s2, [#allocation4]
    $region21: #{tpu_custom_call.1} parent=1 // pred_fallthru
      _
    // Predicated region
    $region22: #{tpu_custom_call.1} parent=1 // pred_check
      _
    $region23: #{tpu_custom_call.1} parent=1 // pred_check_branch
      %105 = sbr.rel (0) target = $region25
    $region24: #{tpu_custom_call.1} parent=1 // pred_region
      %106 = dma.done [#allocation4], 128
    $region25: #{tpu_custom_call.1} parent=1 // pred_fallthru
      _
    %107 = vsyncpa [#allocation3], 1
    %108 = vsyncpa [#allocation6], 1
    %109 = vsyncpa [#allocation4], 1

</llo_original>
